<compile_context>
chip_gen: v6e
topology: v6e:2x2x1
jax: 0.10.0
libtpu: 0.0.40
codegen_flags: <defaults>
</compile_context>

<pallas_src>
import functools

import jax
import jax.numpy as jnp
from jax.experimental import pallas as pl
from jax.experimental.pallas import tpu as pltpu


def _sliding_window_sum(w, out_len, k):
    """Width-k sliding sums along axis 1 of w (shape (bb, out_len + k - 1, c)).

    Uses doubling partial sums + binary decomposition of k: O(log2 k) adds.
    """
    if k == 1:
        return w[:, :out_len, :]
    needed = {1 << j for j in range(k.bit_length()) if (k >> j) & 1}
    keep = {1: w} if 1 in needed else {}
    cur = w                      # sliding sums of width `width`, full length
    width = 1
    while width * 2 <= k:
        n = cur.shape[1] - width
        cur = cur[:, :n, :] + cur[:, width:width + n, :]
        width *= 2
        if width in needed:
            keep[width] = cur
    acc = None
    off = 0
    for b in sorted(needed, reverse=True):
        part = keep[b][:, off:off + out_len, :]
        acc = part if acc is None else acc + part
        off += b
    return acc


def _moving_avg_kernel(*refs, kernel_size, front_n, end_n, has_halo):
    """Sliding-window mean along axis 1 of the current tile.

    refs = (prev_halo, cur, next_halo, out) when has_halo else (cur, out).
    """
    if has_halo:
        prev_ref, cur_ref, next_ref, o_ref = refs
    else:
        cur_ref, o_ref = refs
        prev_ref = next_ref = None

    x = cur_ref[...].astype(jnp.float32)          # single load + single cast
    bb, t_l, c = x.shape

    parts = []
    if front_n > 0:
        head = jnp.broadcast_to(x[:, 0:1, :], (bb, front_n, c))
        if has_halo:
            ph = prev_ref[...].astype(jnp.float32)            # (bb, hb, c)
            halo = ph[:, ph.shape[1] - front_n:, :]
            head = jnp.where(pl.program_id(1) == 0, head, halo)
        parts.append(head)
    parts.append(x)
    if end_n > 0:
        tail = jnp.broadcast_to(x[:, t_l - 1:t_l, :], (bb, end_n, c))
        if has_halo:
            nh = next_ref[...].astype(jnp.float32)            # (bb, hb, c)
            halo = nh[:, :end_n, :]
            is_last = pl.program_id(1) == pl.num_programs(1) - 1
            tail = jnp.where(is_last, tail, halo)
        parts.append(tail)

    # Padded working tile, (bb, t_l + k - 1, c), held in vregs/VMEM only.
    w = parts[0] if len(parts) == 1 else jnp.concatenate(parts, axis=1)

    acc = _sliding_window_sum(w, t_l, kernel_size)
    o_ref[...] = (acc * (1.0 / kernel_size)).astype(o_ref.dtype)


def _choose_seq_tile(L, k, max_rows):
    """Largest multiple-of-8 divisor of L that is >= k-1 and <= max_rows."""
    if L <= max_rows or L % 8 != 0:
        return L
    need = max(k - 1, 8)
    divs = [d for d in range(8, L + 1, 8) if L % d == 0 and d >= need]
    if not divs:
        return L
    small = [d for d in divs if d <= max_rows]
    return max(small) if small else min(divs)


def _choose_halo(t_l, front_n, end_n):
    """Smallest multiple-of-8 divisor of t_l covering the needed halo rows."""
    need = max(front_n, end_n, 1)
    for d in range(8, t_l + 1, 8):
        if t_l % d == 0 and d >= need:
            return d
    return t_l


def _choose_batch_tile(B, t_l, C, itemsize, target_bytes=1 << 20):
    """Fold batches into one block (~target_bytes) to amortize grid steps."""
    per_batch = max(1, t_l * C * itemsize)
    bb = max(1, min(B, target_bytes // per_batch))
    if B >= 2:                       # keep >=2 grid steps for megacore / 2 TCs
        bb = min(bb, max(1, B // 2))
    while B % bb:                    # require an exact divisor of B
        bb -= 1
    return max(bb, 1)


def moving_avg(x: jax.Array, kernel_size: int, *, max_seq_tile: int = 512) -> jax.Array:
    """Equivalent of the PyTorch moving_avg.forward for x of shape (B, L, C)."""
    B, L, C = x.shape
    k = int(kernel_size)
    front_n = k - 1 - (k - 1) // 2
    end_n = (k - 1) // 2

    t_l = _choose_seq_tile(L, k, max_seq_tile)
    n_l = L // t_l
    bb = _choose_batch_tile(B, t_l, C, jnp.dtype(x.dtype).itemsize)
    has_halo = n_l > 1

    kernel = functools.partial(
        _moving_avg_kernel,
        kernel_size=k, front_n=front_n, end_n=end_n, has_halo=has_halo,
    )

    if has_halo:
        hb = _choose_halo(t_l, front_n, end_n)
        nb_per_tile = t_l // hb          # hb-blocks per sequence tile
        n_hb = L // hb                   # total hb-blocks along L
        grid = (B // bb, n_l)
        in_specs = [
            # previous halo: last hb rows before this tile (clamped at lt==0)
            pl.BlockSpec(
                (bb, hb, C),
                lambda b, lt: (b, jnp.maximum(lt * nb_per_tile - 1, 0), 0)),
            # current tile
            pl.BlockSpec((bb, t_l, C), lambda b, lt: (b, lt, 0)),
            # next halo: first hb rows after this tile (clamped at last tile)
            pl.BlockSpec(
                (bb, hb, C),
                lambda b, lt: (b, jnp.minimum((lt + 1) * nb_per_tile, n_hb - 1), 0)),
        ]
        out_specs = pl.BlockSpec((bb, t_l, C), lambda b, lt: (b, lt, 0))
        operands = (x, x, x)
        dims = ("parallel", "parallel")
    else:
        grid = (B // bb,)
        in_specs = [pl.BlockSpec((bb, L, C), lambda b: (b, 0, 0))]
        out_specs = pl.BlockSpec((bb, L, C), lambda b: (b, 0, 0))
        operands = (x,)
        dims = ("parallel",)

    return pl.pallas_call(
        kernel,
        out_shape=jax.ShapeDtypeStruct((B, L, C), x.dtype),
        grid=grid,
        in_specs=in_specs,
        out_specs=out_specs,
        compiler_params=pltpu.CompilerParams(dimension_semantics=dims),
    )(*operands)
    # TODO(synk): for extremely large kernel_size a banded averaging-matrix
    # matmul on the (idle) MXU could replace even the log2(k) VALU adds; not
    # needed for typical FEDformer k<=25.


def _reference_moving_avg(x: jax.Array, kernel_size: int) -> jax.Array:
    """Pure-JAX reference mirroring the PyTorch module exactly."""
    k = int(kernel_size)
    front_n = k - 1 - (k - 1) // 2
    end_n = (k - 1) // 2
    front = jnp.repeat(x[:, 0:1, :], front_n, axis=1)
    end = jnp.repeat(x[:, -1:, :], end_n, axis=1)
    xp = jnp.concatenate([front, x, end], axis=1)
    L = x.shape[1]
    acc = sum(xp[:, j:j + L, :].astype(jnp.float32) for j in range(k))
    return (acc / k).astype(x.dtype)


if __name__ == "__main__":
    key = jax.random.PRNGKey(0)
    k0, k1, k2 = jax.random.split(key, 3)

    # Primary (module-sized) example: batch=2, seq=16, channels=8, k=5.
    B, L, C = 2, 16, 8
    kernel_size = 5
    x = jax.random.normal(k0, (B, L, C), dtype=jnp.float32)

    y = jax.block_until_ready(moving_avg(x, kernel_size))
    assert y.shape == (B, L, C)
    assert jnp.allclose(y, _reference_moving_avg(x, kernel_size),
                        atol=1e-5, rtol=1e-5)

    # Even kernel_size (asymmetric padding) on the single-tile path.
    y_even = jax.block_until_ready(moving_avg(x, 4))
    assert jnp.allclose(y_even, _reference_moving_avg(x, 4),
                        atol=1e-5, rtol=1e-5)

    # Typical FEDformer window (k=25) — exercises the doubling window sum.
    y_25 = jax.block_until_ready(moving_avg(x, 25))
    assert jnp.allclose(y_25, _reference_moving_avg(x, 25),
                        atol=1e-5, rtol=1e-5)

    # Sequence-tiled (halo) path + batch folding: L split into 16-row tiles.
    x2 = jax.random.normal(k1, (4, 64, 8), dtype=jnp.float32)
    y2 = jax.block_until_ready(moving_avg(x2, 7, max_seq_tile=16))
    assert jnp.allclose(y2, _reference_moving_avg(x2, 7),
                        atol=1e-5, rtol=1e-5)

    # Halo path with a large window (k=25, 32-row tiles, 16-row halos).
    x3 = jax.random.normal(k2, (2, 64, 8), dtype=jnp.float32)
    y3 = jax.block_until_ready(moving_avg(x3, 25, max_seq_tile=32))
    assert jnp.allclose(y3, _reference_moving_avg(x3, 25),
                        atol=1e-5, rtol=1e-5)

    print("KERNEL_OK")
</pallas_src>

<mosaic_0001>
module attributes {stable_mosaic.version = 11 : i64} {
  func.func @_moving_avg_kernel(%arg0: i32, %arg1: memref<1x16x8xf32, #tpu.memory_space<vmem>>, %arg2: memref<1x16x8xf32, #tpu.memory_space<vmem>>) attributes {dimension_semantics = [#tpu.dimension_semantics<parallel>], iteration_bounds = array<i64: 2>, scalar_prefetch = 0 : i64, scratch_operands = 0 : i64, tpu.core_type = #tpu.core_type<tc>, window_params = [{transform_indices = @transform_0, window_bounds = array<i64: 1, 16, 8>}, {transform_indices = @transform_1, window_bounds = array<i64: 1, 16, 8>}]} {
    %c0 = arith.constant 0 : index
    %c0_0 = arith.constant 0 : index
    %c0_1 = arith.constant 0 : index
    %0 = vector.load %arg1[%c0, %c0_0, %c0_1] : memref<1x16x8xf32, #tpu.memory_space<vmem>>, vector<1x16x8xf32>
    %1 = vector.extract_strided_slice %0 {offsets = [0, 0, 0], sizes = [1, 1, 8], strides = [1, 1, 1]} : vector<1x16x8xf32> to vector<1x1x8xf32>
    %2 = vector.shape_cast %1 : vector<1x1x8xf32> to vector<1x1x8xf32>
    %3 = vector.broadcast %2 : vector<1x1x8xf32> to vector<1x2x8xf32>
    %4 = vector.extract_strided_slice %0 {offsets = [0, 15, 0], sizes = [1, 1, 8], strides = [1, 1, 1]} : vector<1x16x8xf32> to vector<1x1x8xf32>
    %5 = vector.shape_cast %4 : vector<1x1x8xf32> to vector<1x1x8xf32>
    %6 = vector.broadcast %5 : vector<1x1x8xf32> to vector<1x2x8xf32>
    %7 = tpu.concatenate %3, %0, %6 in 1 : vector<1x2x8xf32>, vector<1x16x8xf32>, vector<1x2x8xf32> -> vector<1x20x8xf32>
    %8 = vector.extract_strided_slice %7 {offsets = [0, 0, 0], sizes = [1, 19, 8], strides = [1, 1, 1]} : vector<1x20x8xf32> to vector<1x19x8xf32>
    %9 = vector.extract_strided_slice %7 {offsets = [0, 1, 0], sizes = [1, 19, 8], strides = [1, 1, 1]} : vector<1x20x8xf32> to vector<1x19x8xf32>
    %10 = arith.addf %8, %9 : vector<1x19x8xf32>
    %11 = vector.extract_strided_slice %10 {offsets = [0, 0, 0], sizes = [1, 17, 8], strides = [1, 1, 1]} : vector<1x19x8xf32> to vector<1x17x8xf32>
    %12 = vector.extract_strided_slice %10 {offsets = [0, 2, 0], sizes = [1, 17, 8], strides = [1, 1, 1]} : vector<1x19x8xf32> to vector<1x17x8xf32>
    %13 = arith.addf %11, %12 : vector<1x17x8xf32>
    %14 = vector.extract_strided_slice %13 {offsets = [0, 0, 0], sizes = [1, 16, 8], strides = [1, 1, 1]} : vector<1x17x8xf32> to vector<1x16x8xf32>
    %15 = vector.extract_strided_slice %7 {offsets = [0, 4, 0], sizes = [1, 16, 8], strides = [1, 1, 1]} : vector<1x20x8xf32> to vector<1x16x8xf32>
    %16 = arith.addf %14, %15 : vector<1x16x8xf32>
    %cst = arith.constant 2.000000e-01 : f32
    %17 = vector.broadcast %cst : f32 to vector<1x16x8xf32>
    %18 = arith.mulf %16, %17 : vector<1x16x8xf32>
    %c0_2 = arith.constant 0 : index
    %c0_3 = arith.constant 0 : index
    %c0_4 = arith.constant 0 : index
    %19 = vector.load %arg2[%c0_2, %c0_3, %c0_4] : memref<1x16x8xf32, #tpu.memory_space<vmem>>, vector<1x16x8xf32>
    tpu.vector_store %arg2[%c0_2, %c0_3, %c0_4], %18 {strides = array<i32>} : memref<1x16x8xf32, #tpu.memory_space<vmem>>, vector<1x16x8xf32>,
    return
  }
  func.func @transform_0(%arg0: i32) -> (i32, i32, i32) {
    %c0_i32 = arith.constant 0 : i32
    %c0_i32_0 = arith.constant 0 : i32
    %c0_i32_1 = arith.constant 0 : i32
    return %arg0, %c0_i32, %c0_i32_0 : i32, i32, i32
  }
  func.func @transform_1(%arg0: i32) -> (i32, i32, i32) {
    %c0_i32 = arith.constant 0 : i32
    %c0_i32_0 = arith.constant 0 : i32
    %c0_i32_1 = arith.constant 0 : i32
    return %arg0, %c0_i32, %c0_i32_0 : i32, i32, i32
  }
}

</mosaic_0001>

<llo_original>
// kernel: tpu_custom_call.1
$region0: #{tpu_custom_call.1}
  #allocation0 [shape = 'u32[]', space=smem, size = 0x4, offset = 0x4, fixed_abs, tag = 'smem constant byte address 0x4 - core index']
  #allocation1 [shape = 'u32[144,128]{1,0:T(1,128)}', space=vmem, size = 0x12000, scoped, tag = 'internal scratch']
  %s0 = inlined_call_operand.vmem [shape: f32[2,16,8], index: 0, kind: input, shape index: {}]
  %s1 = inlined_call_operand.vmem [shape: f32[2,16,8], index: 1, kind: output, shape index: {}]
  %s2 = sld [smem:[#allocation0]]
  $region37: #{tpu_custom_call.1} parent=0
    _
  %s4 = ssub.s32 1, %s2
  %s5 = scalar_select 0, %s4, %s2
  loop: start=0, step=1, limit=4
  $region2: #{tpu_custom_call.1} parent=0 // loop_pre_header
    _
  $region3: #{tpu_custom_call.1} parent=0 // loop_header
    %s7 = sphi 0, %s11
    %p8 = scmp.ge.s32.totalorder %s7, 4
    %s17 = sphi 0, %s19
    %s20 = sphi 0, %s17
    %s21 = sphi 0, %s20
    %s37 = sphi 0, %s21
    %s43 = sphi 0, %s45
    %s46 = sphi 0, %s43
    %s47 = sphi 0, %s46
    %s63 = sphi 0, %s47
  $region4: #{tpu_custom_call.1} parent=0 // loop_header_branch
    %10 = sbr.rel (%p8) target = $region8
  $region5: #{tpu_custom_call.1} parent=0 // loop_body
    %s12 = ssub.s32 %s7, 1
    %s13 = ssub.s32 %s7, 2
    %s14 = sadd.s32 %s7, 1
    %s15 = ssub.s32 %s7, %s14
    %p16 = scmp.eq.s32.totalorder %s15, 0
    %s18 = sadd.s32 %s17, 1
    %s19 = scalar_select %p16, %s17, %s18
    %p22 = pneg %p16
    %p23 = scmp.eq.s32.totalorder %s7, 1
    %p24 = por %p22, %p23
    %p25 = scmp.ne.s32.totalorder %s17, %s20
    %p26 = scmp.eq.s32.totalorder %s7, 0
    %p27 = por %p25, %p26
    %p28 = scmp.ne.s32.totalorder %s17, %s20
    %p29 = scmp.eq.s32.totalorder %s12, 1
    %p30 = por %p28, %p29
    %p31 = scmp.ne.s32.totalorder %s20, %s21
    %p32 = scmp.eq.s32.totalorder %s12, 0
    %p33 = por %p31, %p32
    %p34 = scmp.ne.s32.totalorder %s20, %s21
    %p35 = scmp.eq.s32.totalorder %s13, 1
    %p36 = por %p34, %p35
    %p38 = scmp.ne.s32.totalorder %s21, %s37
    %p39 = scmp.eq.s32.totalorder %s13, 0
    %p40 = por %p38, %p39
    %s41 = ssub.s32 %s7, %s14
    %p42 = scmp.eq.s32.totalorder %s41, 0
    %s44 = sadd.s32 %s43, 1
    %s45 = scalar_select %p42, %s43, %s44
    %p48 = pneg %p42
    %p49 = scmp.eq.s32.totalorder %s7, 1
    %p50 = por %p48, %p49
    %p51 = scmp.ne.s32.totalorder %s43, %s46
    %p52 = scmp.eq.s32.totalorder %s7, 0
    %p53 = por %p51, %p52
    %p54 = scmp.ne.s32.totalorder %s43, %s46
    %p55 = scmp.eq.s32.totalorder %s12, 1
    %p56 = por %p54, %p55
    %p57 = scmp.ne.s32.totalorder %s46, %s47
    %p58 = scmp.eq.s32.totalorder %s12, 0
    %p59 = por %p57, %p58
    %p60 = scmp.ne.s32.totalorder %s46, %s47
    %p61 = scmp.eq.s32.totalorder %s13, 1
    %p62 = por %p60, %p61
    %p64 = scmp.ne.s32.totalorder %s47, %s63
    %p65 = scmp.eq.s32.totalorder %s13, 0
    %p66 = por %p64, %p65
    %p67 = scmp.le.s32.totalorder 1, %s7
    %p68 = scmp.lt.s32.totalorder %s7, 3
    %p69 = pnand %p67, %p68
    %p70 = pneg %p69
    // Predicated region
    $region9: #{tpu_custom_call.1} parent=5 // pred_check
      _
    $region10: #{tpu_custom_call.1} parent=5 // pred_check_branch
      %72 = sbr.rel (%p69) target = $region12
    $region11: #{tpu_custom_call.1} parent=5 // pred_region
      %s73 = ssub.s32 %s7, 1
    $region12: #{tpu_custom_call.1} parent=5 // pred_fallthru
      _
    %p74 = scmp.lt.s32.totalorder %s7, 2
    // Predicated region
    $region13: #{tpu_custom_call.1} parent=5 // pred_check
      %p75 = pneg %p74
    $region14: #{tpu_custom_call.1} parent=5 // pred_check_branch
      %77 = sbr.rel (%p75) target = $region16
    $region15: #{tpu_custom_call.1} parent=5 // pred_region
      // Predicated region
      $region17: #{tpu_custom_call.1} parent=15 // pred_check
        %p78 = pneg %p27
      $region18: #{tpu_custom_call.1} parent=15 // pred_check_branch
        %80 = sbr.rel (%p78) target = $region20
      $region19: #{tpu_custom_call.1} parent=15 // pred_region
        %p81 = scmp.lt.s32.totalorder %s7, 1
        %s82 = scalar_select %p81, %s7, 1
        %s83 = smul.addr %s82, 2
        %s84 = smul.addr %s83, 8
        %s85 = scalar_lea.vmem %s0, %s84
      $region20: #{tpu_custom_call.1} parent=15 // pred_fallthru
        _
    $region16: #{tpu_custom_call.1} parent=5 // pred_fallthru
      _
    %p86 = scmp.le.s32.totalorder 1, %s7
    %p87 = scmp.lt.s32.totalorder %s7, 3
    %p88 = pnand %p86, %p87
    %p89 = pneg %p88
    // Predicated region
    $region21: #{tpu_custom_call.1} parent=5 // pred_check
      _
    $region22: #{tpu_custom_call.1} parent=5 // pred_check_branch
      %91 = sbr.rel (%p88) target = $region24
    $region23: #{tpu_custom_call.1} parent=5 // pred_region
      %s92 = ssub.s32 %s7, 1
      %p93 = scmp.lt.s32.totalorder %s12, 1
      %s94 = scalar_select %p93, %s12, 1
      %s95 = smul.addr %s94, 2
      %s96 = smul.addr %s95, 8
      %s97 = scalar_lea.vmem %s0, %s96
      %p98 = pneg %p33
      %p99 = pneg %p30
      %p100 = pneg %p59
      %p101 = pneg %p56
      %p102 = scmp.lt.s32.totalorder %s12, 1
      %s103 = scalar_select %p102, %s12, 1
      %s104 = smul.addr %s103, 2
      %s105 = smul.addr %s104, 8
      %s106 = scalar_lea.vmem %s1, %s105
      %p107 = scmp.lt.s32.totalorder %s12, 1
      %s108 = scalar_select %p107, %s12, 1
      %s109 = smul.addr %s108, 2
      %s110 = smul.addr %s109, 8
      %s111 = scalar_lea.vmem %s0, %s110
      %p112 = scmp.lt.s32.totalorder %s12, 1
      %s113 = scalar_select %p112, %s12, 1
      %s114 = smul.addr %s113, 2
      %s115 = smul.addr %s114, 8
      %s116 = scalar_lea.vmem %s1, %s115
      %v117 = vld [vmem:[%s111] sm:$0xff]
      %v118 = vld [vmem:[%s111 + $0x8] sm:$0xff]
      %v119 = vlaneseq
      %v120 = vshrl.u32 %v119, 7
      %v121 = vsub.s32 0, %v120
      %v122 = vrot.slane %v117, %v121
      %v123 = vlaneseq
      %v124 = vshrl.u32 %v123, 7
      %v125 = vsub.s32 7, %v124
      %v126 = vrot.slane %v118, %v125
      %vm129 = vcmask 1041408
      %v130 = vrot.slane %v117, 6
      %v131 = vrot.slane %v118, 6
      %v132 = vsel %vm129, %v130, %v131
      %v136 = vsel %vm129, %v122, %v130
      %v137 = vsel %vm129, %v131, %v126
      %vm140 = vcmask 1046528
      %v141 = vrot.slane %v136, 1
      %v142 = vrot.slane %v132, 1
      %v143 = vsel %vm140, %v141, %v142
      %v144 = vrot.slane %v137, 1
      %v145 = vsel %vm140, %v142, %v144
      %v149 = vadd.f32 %v136, %v143
      %v150 = vadd.f32 %v132, %v145
      %v151 = vadd.f32 %v137, %v144
      %vm155 = vcmask 1045504
      %v156 = vrot.slane %v149, 2
      %v157 = vrot.slane %v150, 2
      %v158 = vsel %vm155, %v156, %v157
      %v159 = vrot.slane %v151, 2
      %v160 = vsel %vm155, %v157, %v159
      %v163 = vadd.f32 %v149, %v158
      %v164 = vadd.f32 %v150, %v160
      %vm165 = vcmask 1043456
      %v166 = vrot.slane %v136, 4
      %v167 = vrot.slane %v132, 4
      %v168 = vsel %vm165, %v166, %v167
      %v169 = vrot.slane %v137, 4
      %v170 = vsel %vm165, %v167, %v169
      %v173 = vadd.f32 %v163, %v168
      %v174 = vadd.f32 %v164, %v170
      %v175 = vmul.f32 %v173, 0.2
      %v176 = vmul.f32 %v174, 0.2
      %vm177 = vcmask 64512
      %178 = vst.msk [vmem:[%s116] sm:$0xff] %vm177, %v175
      %179 = vst.msk [vmem:[%s116 + $0x8] sm:$0xff] %vm177, %v176
      %p180 = scmp.lt.s32.totalorder %s12, 1
      %s181 = scalar_select %p180, %s12, 1
      %s182 = smul.addr %s181, 2
      %s183 = smul.addr %s182, 8
      %s184 = scalar_lea.vmem %s1, %s183
      // Predicated region
      $region25: #{tpu_custom_call.1} parent=23 // pred_check
        %p185 = pneg %p56
      $region26: #{tpu_custom_call.1} parent=23 // pred_check_branch
        %187 = sbr.rel (%p185) target = $region28
      $region27: #{tpu_custom_call.1} parent=23 // pred_region
        _
      $region28: #{tpu_custom_call.1} parent=23 // pred_fallthru
        _
    $region24: #{tpu_custom_call.1} parent=5 // pred_fallthru
      _
    %p188 = scmp.le.s32.totalorder 2, %s7
    // Predicated region
    $region29: #{tpu_custom_call.1} parent=5 // pred_check
      %p189 = pneg %p188
    $region30: #{tpu_custom_call.1} parent=5 // pred_check_branch
      %191 = sbr.rel (%p189) target = $region32
    $region31: #{tpu_custom_call.1} parent=5 // pred_region
      %s192 = ssub.s32 %s7, 2
      // Predicated region
      $region33: #{tpu_custom_call.1} parent=31 // pred_check
        %p193 = pneg %p62
      $region34: #{tpu_custom_call.1} parent=31 // pred_check_branch
        %195 = sbr.rel (%p193) target = $region36
      $region35: #{tpu_custom_call.1} parent=31 // pred_region
        %p196 = scmp.lt.s32.totalorder %s13, 1
        %s197 = scalar_select %p196, %s13, 1
        %s198 = smul.addr %s197, 2
        %s199 = smul.addr %s198, 8
        %s200 = scalar_lea.vmem %s1, %s199
      $region36: #{tpu_custom_call.1} parent=31 // pred_fallthru
        _
    $region32: #{tpu_custom_call.1} parent=5 // pred_fallthru
      _
  $region6: #{tpu_custom_call.1} parent=0 // loop_footer
    %s11 = sadd.s32 1, %s7
  $region7: #{tpu_custom_call.1} parent=0 // loop_footer_branch
    %6 = sbr.rel target = $region3
  $region8: #{tpu_custom_call.1} parent=0 // loop_exit
    _

</llo_original>
